<compile_context>
chip_gen: v6e
topology: v6e:2x2x1
jax: 0.10.0
libtpu: 0.0.40
codegen_flags: <defaults>
</compile_context>

<pallas_src>
import functools

import jax
import jax.numpy as jnp
from jax.experimental import pallas as pl
from jax.experimental.pallas import tpu as pltpu


def _round_up(x, m):
    return (x + m - 1) // m * m


# ---------------------------------------------------------------------------
# Kernel A: projection.  Tiled over node rows; W / a1 / a2 stay resident.
#   h  = x @ W          (MXU, caller dtype operands, f32 accumulation)
#   f1 = sum(h * a1, -1)   f2 = sum(h * a2, -1)    (VPU + lane reduction)
# ---------------------------------------------------------------------------
def _gat_project_kernel(x_ref, w_ref, a1_ref, a2_ref, h_ref, f1_ref, f2_ref):
    h = jnp.dot(x_ref[...], w_ref[...], preferred_element_type=jnp.float32)
    a1 = a1_ref[...].astype(jnp.float32)          # (1, F_out) row
    a2 = a2_ref[...].astype(jnp.float32)
    f1_ref[...] = jnp.sum(h * a1, axis=-1, keepdims=True)   # (tile, 1)
    f2_ref[...] = jnp.sum(h * a2, axis=-1, keepdims=True)   # (tile, 1)
    h_ref[...] = h.astype(h_ref.dtype)


# ---------------------------------------------------------------------------
# Kernel B: masked softmax + aggregation, flash-style over the j axis.
# grid = (num_i_tiles, num_j_tiles); i parallel, j arbitrary (reduction).
# ---------------------------------------------------------------------------
def _gat_attention_kernel(f1_ref, f2t_ref, mask_ref, h_ref, o_ref,
                          m_ref, l_ref, acc_ref, *, alpha):
    j = pl.program_id(1)

    @pl.when(j == 0)
    def _init():
        m_ref[...] = jnp.full(m_ref.shape, -jnp.inf, jnp.float32)
        l_ref[...] = jnp.zeros(l_ref.shape, jnp.float32)
        acc_ref[...] = jnp.zeros(acc_ref.shape, jnp.float32)

    # e[i, j] = leakyrelu(f1[i] + f2[j])    (f32, VPU)
    e = f1_ref[...] + f2t_ref[...]                       # (ti,1)+(1,tj) -> (ti,tj)
    e = jnp.where(e > 0, e, alpha * e)

    # mask: 1 edge, 0 non-edge (-9e15, as in the PyTorch module), -1 padding.
    mask = mask_ref[...]
    logits = jnp.where(mask > 0, e,
                       jnp.where(mask < 0, -jnp.inf, jnp.float32(-9.0e15)))

    # Online softmax update along j.
    m_prev = m_ref[...]
    m_new = jnp.maximum(m_prev, jnp.max(logits, axis=-1, keepdims=True))
    corr = jnp.exp(m_prev - m_new)
    p = jnp.exp(logits - m_new)                          # (ti, tj) f32
    l_ref[...] = corr * l_ref[...] + jnp.sum(p, axis=-1, keepdims=True)

    # h is resident (full (n_pad, F_out) block); slice the current j tile.
    tj = f2t_ref.shape[-1]
    start = pl.multiple_of(j * tj, tj)
    h_j = h_ref[pl.ds(start, tj), :]                     # (tj, F_out)
    acc_ref[...] = corr * acc_ref[...] + jnp.dot(
        p.astype(h_j.dtype), h_j, preferred_element_type=jnp.float32)
    m_ref[...] = m_new

    @pl.when(j == pl.num_programs(1) - 1)
    def _finalize():
        h_prime = acc_ref[...] * pl.reciprocal(l_ref[...], approx=True)
        # ELU (concat=True branch). Clamp so the untaken exp branch can't inf.
        neg_branch = jnp.exp(jnp.minimum(h_prime, 0.0)) - 1.0
        o_ref[...] = jnp.where(h_prime > 0, h_prime, neg_branch).astype(o_ref.dtype)


def gat_layer(x, adj, W, a, *, alpha=0.2, tile=128):
    """Forward pass matching PyTorch GraphAttentionLayer (eval, concat=True)."""
    N, f_in = x.shape
    f_out = W.shape[1]
    assert adj.shape == (N, N)
    assert a.shape == (2 * f_out, 1)
    assert tile % 128 == 0

    compute_dtype = x.dtype                 # bf16 inputs -> bf16 MXU operands
    n_pad = _round_up(N, tile)
    pad = n_pad - N

    # Attention vector halves as (1, F_out) rows (VPU-friendly layout).
    a1 = a[:f_out, :].reshape(1, f_out)
    a2 = a[f_out:, :].reshape(1, f_out)

    x_p = jnp.pad(x, ((0, pad), (0, 0))) if pad else x

    # int8 edge mask; padded columns are -1 (hard-excluded with -inf).
    mask = (adj > 0).astype(jnp.int8)
    if pad:
        mask = jnp.pad(mask, ((0, pad), (0, pad)))
        mask = mask.at[:, N:].set(jnp.int8(-1))

    # ---------------- kernel A: h, f1, f2 ----------------
    grid_a = (n_pad // tile,)
    h, f1, f2 = pl.pallas_call(
        _gat_project_kernel,
        out_shape=(
            jax.ShapeDtypeStruct((n_pad, f_out), compute_dtype),
            jax.ShapeDtypeStruct((n_pad, 1), jnp.float32),
            jax.ShapeDtypeStruct((n_pad, 1), jnp.float32),
        ),
        grid_spec=pltpu.PrefetchScalarGridSpec(
            num_scalar_prefetch=0,
            grid=grid_a,
            in_specs=[
                pl.BlockSpec((tile, f_in), lambda i: (i, 0)),
                pl.BlockSpec((f_in, f_out), lambda i: (0, 0)),   # resident
                pl.BlockSpec((1, f_out), lambda i: (0, 0)),      # resident
                pl.BlockSpec((1, f_out), lambda i: (0, 0)),      # resident
            ],
            out_specs=[
                pl.BlockSpec((tile, f_out), lambda i: (i, 0)),
                pl.BlockSpec((tile, 1), lambda i: (i, 0)),
                pl.BlockSpec((tile, 1), lambda i: (i, 0)),
            ],
        ),
        compiler_params=pltpu.CompilerParams(
            dimension_semantics=("parallel",)),
    )(x_p, W, a1, a2)

    # Wrapper-side layout plumbing: present f2 as a (1, N) row so the kernel
    # broadcast needs no in-kernel transpose.
    f2t = f2.reshape(1, n_pad)

    # ---------------- kernel B: masked softmax + aggregation ----------------
    grid_b = (n_pad // tile, n_pad // tile)
    kernel_b = functools.partial(_gat_attention_kernel, alpha=float(alpha))
    out = pl.pallas_call(
        kernel_b,
        out_shape=jax.ShapeDtypeStruct((n_pad, f_out), x.dtype),
        grid_spec=pltpu.PrefetchScalarGridSpec(
            num_scalar_prefetch=0,
            grid=grid_b,
            in_specs=[
                pl.BlockSpec((tile, 1), lambda i, j: (i, 0)),       # f1 column
                pl.BlockSpec((1, tile), lambda i, j: (0, j)),       # f2 row
                # adj int8 mask tile; if a bundle dump shows exposed DMA waits
                # on v6e, add pipeline_mode=pl.Buffered(3) here.
                pl.BlockSpec((tile, tile), lambda i, j: (i, j)),
                pl.BlockSpec((n_pad, f_out), lambda i, j: (0, 0)),  # h resident
            ],
            out_specs=pl.BlockSpec((tile, f_out), lambda i, j: (i, 0)),
            scratch_shapes=[
                pltpu.VMEM((tile, 1), jnp.float32),       # m (running max)
                pltpu.VMEM((tile, 1), jnp.float32),       # l (running denom)
                pltpu.VMEM((tile, f_out), jnp.float32),   # acc
            ],
        ),
        compiler_params=pltpu.CompilerParams(
            dimension_semantics=("parallel", "arbitrary")),
    )(f1, f2t, mask, h)

    return out[:N] if pad else out


# ---------------------------------------------------------------------------
# Reference + demo
# ---------------------------------------------------------------------------
def _xavier_uniform(key, shape, gain):
    fan_in, fan_out = shape[0], shape[1]
    bound = gain * jnp.sqrt(6.0 / (fan_in + fan_out))
    return jax.random.uniform(key, shape, jnp.float32, -bound, bound)


def _gat_reference(x, adj, W, a, alpha):
    x, adj, W, a = (jnp.asarray(v, jnp.float32) for v in (x, adj, W, a))
    f_out = W.shape[1]
    h = x @ W
    e = h @ a[:f_out] + (h @ a[f_out:]).T
    e = jnp.where(e > 0, e, alpha * e)
    logits = jnp.where(adj > 0, e, -9.0e15)
    attn = jax.nn.softmax(logits, axis=1)
    return jax.nn.elu(attn @ h)


def _make_inputs(key, n, f_in, f_out, dtype):
    k_x, k_adj, k_w, k_a = jax.random.split(key, 4)
    x = jax.random.normal(k_x, (n, f_in), jnp.float32)
    adj = (jax.random.uniform(k_adj, (n, n)) < 0.2).astype(jnp.float32)
    adj = jnp.maximum(adj, jnp.eye(n, dtype=jnp.float32))   # self loops
    W = _xavier_uniform(k_w, (f_in, f_out), gain=1.414)
    a = _xavier_uniform(k_a, (2 * f_out, 1), gain=1.414)
    return x.astype(dtype), adj, W.astype(dtype), a.astype(dtype)


if __name__ == "__main__":
    ALPHA = 0.2
    k0, k1, k2 = jax.random.split(jax.random.PRNGKey(0), 3)

    # 1) f32, tile-aligned N (2x2 grid with tile=128), lane-dense F_out=128.
    x, adj, W, a = _make_inputs(k0, 256, 32, 128, jnp.float32)
    out = gat_layer(x, adj, W, a, alpha=ALPHA, tile=128)
    jax.block_until_ready(out)
    ref = _gat_reference(x, adj, W, a, ALPHA)
    assert out.shape == ref.shape
    assert jnp.allclose(out, ref, atol=2e-3, rtol=2e-3), "f32 mismatch"

    # 2) f32, N not a multiple of the tile (exercises padding / -inf mask).
    x, adj, W, a = _make_inputs(k1, 200, 32, 64, jnp.float32)
    out = gat_layer(x, adj, W, a, alpha=ALPHA, tile=128)
    jax.block_until_ready(out)
    ref = _gat_reference(x, adj, W, a, ALPHA)
    assert jnp.allclose(out, ref, atol=2e-3, rtol=2e-3), "padded f32 mismatch"

    # 3) bf16 operands on the MXU (f32 accumulation in-kernel).
    x, adj, W, a = _make_inputs(k2, 256, 32, 128, jnp.bfloat16)
    out = gat_layer(x, adj, W, a, alpha=ALPHA, tile=128)
    jax.block_until_ready(out)
    ref = _gat_reference(x, adj, W, a, ALPHA)
    assert jnp.allclose(out.astype(jnp.float32), ref, atol=5e-2, rtol=5e-2), \
        "bf16 mismatch"

    print("KERNEL_OK")
</pallas_src>

<mosaic_0001>
module attributes {stable_mosaic.version = 11 : i64} {
  func.func @_gat_project_kernel(%arg0: i32, %arg1: memref<128x32xf32, #tpu.memory_space<vmem>>, %arg2: memref<32x128xf32, #tpu.memory_space<vmem>>, %arg3: memref<1x128xf32, #tpu.memory_space<vmem>>, %arg4: memref<1x128xf32, #tpu.memory_space<vmem>>, %arg5: memref<128x128xf32, #tpu.memory_space<vmem>>, %arg6: memref<128x1xf32, #tpu.memory_space<vmem>>, %arg7: memref<128x1xf32, #tpu.memory_space<vmem>>) attributes {dimension_semantics = [#tpu.dimension_semantics<parallel>], iteration_bounds = array<i64: 2>, scalar_prefetch = 0 : i64, scratch_operands = 0 : i64, tpu.core_type = #tpu.core_type<tc>, window_params = [{transform_indices = @transform_0, window_bounds = array<i64: 128, 32>}, {pipeline_mode = #tpu.pipeline_mode<synchronous>, transform_indices = @transform_1, window_bounds = array<i64: 32, 128>}, {pipeline_mode = #tpu.pipeline_mode<synchronous>, transform_indices = @transform_2, window_bounds = array<i64: 1, 128>}, {pipeline_mode = #tpu.pipeline_mode<synchronous>, transform_indices = @transform_3, window_bounds = array<i64: 1, 128>}, {transform_indices = @transform_4, window_bounds = array<i64: 128, 128>}, {transform_indices = @transform_5, window_bounds = array<i64: 128, 1>}, {transform_indices = @transform_6, window_bounds = array<i64: 128, 1>}]} {
    %c0 = arith.constant 0 : index
    %c0_0 = arith.constant 0 : index
    %0 = vector.load %arg1[%c0, %c0_0] : memref<128x32xf32, #tpu.memory_space<vmem>>, vector<128x32xf32>
    %c0_1 = arith.constant 0 : index
    %c0_2 = arith.constant 0 : index
    %1 = vector.load %arg2[%c0_1, %c0_2] : memref<32x128xf32, #tpu.memory_space<vmem>>, vector<32x128xf32>
    %cst = arith.constant dense<0.000000e+00> : vector<128x128xf32>
    %2 = tpu.matmul %0, %1, %cst {dimension_numbers = #tpu.dot_dimension_numbers<[1], [0], [0], [1], [0, 0, 1, 1], [], []>} : vector<128x32xf32>, vector<32x128xf32>, vector<128x128xf32> -> vector<128x128xf32>
    %c0_3 = arith.constant 0 : index
    %c0_4 = arith.constant 0 : index
    %3 = vector.load %arg3[%c0_3, %c0_4] : memref<1x128xf32, #tpu.memory_space<vmem>>, vector<1x128xf32>
    %c0_5 = arith.constant 0 : index
    %c0_6 = arith.constant 0 : index
    %4 = vector.load %arg4[%c0_5, %c0_6] : memref<1x128xf32, #tpu.memory_space<vmem>>, vector<1x128xf32>
    %5 = vector.broadcast %3 : vector<1x128xf32> to vector<128x128xf32>
    %6 = arith.mulf %2, %5 : vector<128x128xf32>
    %cst_7 = arith.constant dense<0.000000e+00> : vector<128xf32>
    %7 = vector.multi_reduction <add>, %6, %cst_7 [1] : vector<128x128xf32> to vector<128xf32>
    %8 = vector.shape_cast %7 : vector<128xf32> to vector<128x1xf32>
    %c0_8 = arith.constant 0 : index
    %c0_9 = arith.constant 0 : index
    %9 = vector.load %arg6[%c0_8, %c0_9] : memref<128x1xf32, #tpu.memory_space<vmem>>, vector<128x1xf32>
    tpu.vector_store %arg6[%c0_8, %c0_9], %8 {strides = array<i32>} : memref<128x1xf32, #tpu.memory_space<vmem>>, vector<128x1xf32>,
    %10 = vector.broadcast %4 : vector<1x128xf32> to vector<128x128xf32>
    %11 = arith.mulf %2, %10 : vector<128x128xf32>
    %cst_10 = arith.constant dense<0.000000e+00> : vector<128xf32>
    %12 = vector.multi_reduction <add>, %11, %cst_10 [1] : vector<128x128xf32> to vector<128xf32>
    %13 = vector.shape_cast %12 : vector<128xf32> to vector<128x1xf32>
    %c0_11 = arith.constant 0 : index
    %c0_12 = arith.constant 0 : index
    %14 = vector.load %arg7[%c0_11, %c0_12] : memref<128x1xf32, #tpu.memory_space<vmem>>, vector<128x1xf32>
    tpu.vector_store %arg7[%c0_11, %c0_12], %13 {strides = array<i32>} : memref<128x1xf32, #tpu.memory_space<vmem>>, vector<128x1xf32>,
    %c0_13 = arith.constant 0 : index
    %c0_14 = arith.constant 0 : index
    %15 = vector.load %arg5[%c0_13, %c0_14] : memref<128x128xf32, #tpu.memory_space<vmem>>, vector<128x128xf32>
    tpu.vector_store %arg5[%c0_13, %c0_14], %2 {strides = array<i32>} : memref<128x128xf32, #tpu.memory_space<vmem>>, vector<128x128xf32>,
    return
  }
  func.func @transform_0(%arg0: i32) -> (i32, i32) {
    %c0_i32 = arith.constant 0 : i32
    %c0_i32_0 = arith.constant 0 : i32
    return %arg0, %c0_i32 : i32, i32
  }
  func.func @transform_1(%arg0: i32) -> (i32, i32) {
    %c0_i32 = arith.constant 0 : i32
    %c0_i32_0 = arith.constant 0 : i32
    %c0_i32_1 = arith.constant 0 : i32
    return %c0_i32, %c0_i32_0 : i32, i32
  }
  func.func @transform_2(%arg0: i32) -> (i32, i32) {
    %c0_i32 = arith.constant 0 : i32
    %c0_i32_0 = arith.constant 0 : i32
    %c0_i32_1 = arith.constant 0 : i32
    return %c0_i32, %c0_i32_0 : i32, i32
  }
  func.func @transform_3(%arg0: i32) -> (i32, i32) {
    %c0_i32 = arith.constant 0 : i32
    %c0_i32_0 = arith.constant 0 : i32
    %c0_i32_1 = arith.constant 0 : i32
    return %c0_i32, %c0_i32_0 : i32, i32
  }
  func.func @transform_4(%arg0: i32) -> (i32, i32) {
    %c0_i32 = arith.constant 0 : i32
    %c0_i32_0 = arith.constant 0 : i32
    return %arg0, %c0_i32 : i32, i32
  }
  func.func @transform_5(%arg0: i32) -> (i32, i32) {
    %c0_i32 = arith.constant 0 : i32
    %c0_i32_0 = arith.constant 0 : i32
    return %arg0, %c0_i32 : i32, i32
  }
  func.func @transform_6(%arg0: i32) -> (i32, i32) {
    %c0_i32 = arith.constant 0 : i32
    %c0_i32_0 = arith.constant 0 : i32
    return %arg0, %c0_i32 : i32, i32
  }
}

</mosaic_0001>

<llo_original>
// kernel: tpu_custom_call.1
$region0: #{tpu_custom_call.1}
  #allocation0 [shape = 'u32[]', space=smem, size = 0x4, offset = 0x4, fixed_abs, tag = 'smem constant byte address 0x4 - core index']
  #allocation1 [shape = 'u32[144,128]{1,0:T(1,128)}', space=vmem, size = 0x12000, scoped, tag = 'internal scratch']
  %s0 = inlined_call_operand.vmem [shape: f32[256,32], index: 0, kind: input, shape index: {}]
  %s1 = inlined_call_operand.vmem [shape: f32[32,128], index: 1, kind: input, shape index: {}]
  %s2 = inlined_call_operand.vmem [shape: f32[1,128], index: 2, kind: input, shape index: {}]
  %s3 = inlined_call_operand.vmem [shape: f32[1,128], index: 3, kind: input, shape index: {}]
  %s4 = inlined_call_operand.hbm [shape: f32[256,128], index: 4, kind: output, shape index: {0}]
  %s5 = inlined_call_operand.vmem [shape: f32[256,1], index: 5, kind: output, shape index: {1}]
  %s6 = inlined_call_operand.vmem [shape: f32[256,1], index: 6, kind: output, shape index: {2}]
  %7 = xla_tuple %s4, %s5, %s6
  %s8 = sld [smem:[#allocation0]]
  $region65: #{tpu_custom_call.1} parent=0
    _
  %s10 = ssub.s32 1, %s8
  %s11 = scalar_select 0, %s10, %s8
  $region1: #{tpu_custom_call.1} parent=0
    #allocation2 [shape = 'u8[131072]{0}', space=vmem, size = 0x20000, scoped, tag = 'output window, operand 0']
    #allocation3 [shape = 's32[2]{0}', space=sflag, size = 0x8, scoped, tag = 'scoped memory for tpu_custom_call.1']
    %12 = vsyncpa [#allocation3], 0
    %s13 = scalar_lea.sflag [#allocation3], 1
    %14 = vsyncpa %s13, 0
    loop: start=0, step=1, limit=4
    $region2: #{tpu_custom_call.1} parent=1 // loop_pre_header
      _
    $region3: #{tpu_custom_call.1} parent=1 // loop_header
      %s16 = sphi 0, %s20
      %p17 = scmp.ge.s32.totalorder %s16, 4
      %s26 = sphi 0, %s28
      %s29 = sphi 0, %s26
      %s30 = sphi 0, %s29
      %s46 = sphi 0, %s30
      %s50 = sphi 0, %s50
      %s52 = sphi 0, %s50
      %s53 = sphi 0, %s52
      %s67 = sphi 0, %s53
      %s71 = sphi 0, %s71
      %s73 = sphi 0, %s71
      %s74 = sphi 0, %s73
      %s88 = sphi 0, %s74
      %s92 = sphi 0, %s92
      %s94 = sphi 0, %s92
      %s95 = sphi 0, %s94
      %s109 = sphi 0, %s95
      %s115 = sphi 0, %s117
      %s118 = sphi 0, %s115
      %s119 = sphi 0, %s118
      %s135 = sphi 0, %s119
      %s141 = sphi 0, %s143
      %s144 = sphi 0, %s141
      %s145 = sphi 0, %s144
      %s161 = sphi 0, %s145
      %s167 = sphi 0, %s169
      %s170 = sphi 0, %s167
      %s171 = sphi 0, %s170
      %s187 = sphi 0, %s171
    $region4: #{tpu_custom_call.1} parent=1 // loop_header_branch
      %19 = sbr.rel (%p17) target = $region8
    $region5: #{tpu_custom_call.1} parent=1 // loop_body
      %s21 = ssub.s32 %s16, 1
      %s22 = ssub.s32 %s16, 2
      %s23 = sadd.s32 %s16, 1
      %s24 = ssub.s32 %s16, %s23
      %p25 = scmp.eq.s32.totalorder %s24, 0
      %s27 = sadd.s32 %s26, 1
      %s28 = scalar_select %p25, %s26, %s27
      %p31 = pneg %p25
      %p32 = scmp.eq.s32.totalorder %s16, 1
      %p33 = por %p31, %p32
      %p34 = scmp.ne.s32.totalorder %s26, %s29
      %p35 = scmp.eq.s32.totalorder %s16, 0
      %p36 = por %p34, %p35
      %p37 = scmp.ne.s32.totalorder %s26, %s29
      %p38 = scmp.eq.s32.totalorder %s21, 1
      %p39 = por %p37, %p38
      %p40 = scmp.ne.s32.totalorder %s29, %s30
      %p41 = scmp.eq.s32.totalorder %s21, 0
      %p42 = por %p40, %p41
      %p43 = scmp.ne.s32.totalorder %s29, %s30
      %p44 = scmp.eq.s32.totalorder %s22, 1
      %p45 = por %p43, %p44
      %p47 = scmp.ne.s32.totalorder %s30, %s46
      %p48 = scmp.eq.s32.totalorder %s22, 0
      %p49 = por %p47, %p48
      %s51 = sadd.s32 %s50, 1
      %p54 = scmp.eq.s32.totalorder %s16, 1
      %p55 = scmp.ne.s32.totalorder %s50, %s52
      %p56 = scmp.eq.s32.totalorder %s16, 0
      %p57 = por %p55, %p56
      %p58 = scmp.ne.s32.totalorder %s50, %s52
      %p59 = scmp.eq.s32.totalorder %s21, 1
      %p60 = por %p58, %p59
      %p61 = scmp.ne.s32.totalorder %s52, %s53
      %p62 = scmp.eq.s32.totalorder %s21, 0
      %p63 = por %p61, %p62
      %p64 = scmp.ne.s32.totalorder %s52, %s53
      %p65 = scmp.eq.s32.totalorder %s22, 1
      %p66 = por %p64, %p65
      %p68 = scmp.ne.s32.totalorder %s53, %s67
      %p69 = scmp.eq.s32.totalorder %s22, 0
      %p70 = por %p68, %p69
      %s72 = sadd.s32 %s71, 1
      %p75 = scmp.eq.s32.totalorder %s16, 1
      %p76 = scmp.ne.s32.totalorder %s71, %s73
      %p77 = scmp.eq.s32.totalorder %s16, 0
      %p78 = por %p76, %p77
      %p79 = scmp.ne.s32.totalorder %s71, %s73
      %p80 = scmp.eq.s32.totalorder %s21, 1
      %p81 = por %p79, %p80
      %p82 = scmp.ne.s32.totalorder %s73, %s74
      %p83 = scmp.eq.s32.totalorder %s21, 0
      %p84 = por %p82, %p83
      %p85 = scmp.ne.s32.totalorder %s73, %s74
      %p86 = scmp.eq.s32.totalorder %s22, 1
      %p87 = por %p85, %p86
      %p89 = scmp.ne.s32.totalorder %s74, %s88
      %p90 = scmp.eq.s32.totalorder %s22, 0
      %p91 = por %p89, %p90
      %s93 = sadd.s32 %s92, 1
      %p96 = scmp.eq.s32.totalorder %s16, 1
      %p97 = scmp.ne.s32.totalorder %s92, %s94
      %p98 = scmp.eq.s32.totalorder %s16, 0
      %p99 = por %p97, %p98
      %p100 = scmp.ne.s32.totalorder %s92, %s94
      %p101 = scmp.eq.s32.totalorder %s21, 1
      %p102 = por %p100, %p101
      %p103 = scmp.ne.s32.totalorder %s94, %s95
      %p104 = scmp.eq.s32.totalorder %s21, 0
      %p105 = por %p103, %p104
      %p106 = scmp.ne.s32.totalorder %s94, %s95
      %p107 = scmp.eq.s32.totalorder %s22, 1
      %p108 = por %p106, %p107
      %p110 = scmp.ne.s32.totalorder %s95, %s109
      %p111 = scmp.eq.s32.totalorder %s22, 0
      %p112 = por %p110, %p111
      %s113 = ssub.s32 %s16, %s23
      %p114 = scmp.eq.s32.totalorder %s113, 0
      %s116 = sadd.s32 %s115, 1
      %s117 = scalar_select %p114, %s115, %s116
      %p120 = pneg %p114
      %p121 = scmp.eq.s32.totalorder %s16, 1
      %p122 = por %p120, %p121
      %p123 = scmp.ne.s32.totalorder %s115, %s118
      %p124 = scmp.eq.s32.totalorder %s16, 0
      %p125 = por %p123, %p124
      %p126 = scmp.ne.s32.totalorder %s115, %s118
      %p127 = scmp.eq.s32.totalorder %s21, 1
      %p128 = por %p126, %p127
      %p129 = scmp.ne.s32.totalorder %s118, %s119
      %p130 = scmp.eq.s32.totalorder %s21, 0
      %p131 = por %p129, %p130
      %p132 = scmp.ne.s32.totalorder %s118, %s119
      %p133 = scmp.eq.s32.totalorder %s22, 1
      %p134 = por %p132, %p133
      %p136 = scmp.ne.s32.totalorder %s119, %s135
      %p137 = scmp.eq.s32.totalorder %s22, 0
      %p138 = por %p136, %p137
      %s139 = ssub.s32 %s16, %s23
      %p140 = scmp.eq.s32.totalorder %s139, 0
      %s142 = sadd.s32 %s141, 1
      %s143 = scalar_select %p140, %s141, %s142
      %p146 = pneg %p140
      %p147 = scmp.eq.s32.totalorder %s16, 1
      %p148 = por %p146, %p147
      %p149 = scmp.ne.s32.totalorder %s141, %s144
      %p150 = scmp.eq.s32.totalorder %s16, 0
      %p151 = por %p149, %p150
      %p152 = scmp.ne.s32.totalorder %s141, %s144
      %p153 = scmp.eq.s32.totalorder %s21, 1
      %p154 = por %p152, %p153
      %p155 = scmp.ne.s32.totalorder %s144, %s145
      %p156 = scmp.eq.s32.totalorder %s21, 0
      %p157 = por %p155, %p156
      %p158 = scmp.ne.s32.totalorder %s144, %s145
      %p159 = scmp.eq.s32.totalorder %s22, 1
      %p160 = por %p158, %p159
      %p162 = scmp.ne.s32.totalorder %s145, %s161
      %p163 = scmp.eq.s32.totalorder %s22, 0
      %p164 = por %p162, %p163
      %s165 = ssub.s32 %s16, %s23
      %p166 = scmp.eq.s32.totalorder %s165, 0
      %s168 = sadd.s32 %s167, 1
      %s169 = scalar_select %p166, %s167, %s168
      %p172 = pneg %p166
      %p173 = scmp.eq.s32.totalorder %s16, 1
      %p174 = por %p172, %p173
      %p175 = scmp.ne.s32.totalorder %s167, %s170
      %p176 = scmp.eq.s32.totalorder %s16, 0
      %p177 = por %p175, %p176
      %p178 = scmp.ne.s32.totalorder %s167, %s170
      %p179 = scmp.eq.s32.totalorder %s21, 1
      %p180 = por %p178, %p179
      %p181 = scmp.ne.s32.totalorder %s170, %s171
      %p182 = scmp.eq.s32.totalorder %s21, 0
      %p183 = por %p181, %p182
      %p184 = scmp.ne.s32.totalorder %s170, %s171
      %p185 = scmp.eq.s32.totalorder %s22, 1
      %p186 = por %p184, %p185
      %p188 = scmp.ne.s32.totalorder %s171, %s187
      %p189 = scmp.eq.s32.totalorder %s22, 0
      %p190 = por %p188, %p189
      %p191 = scmp.le.s32.totalorder 1, %s16
      %p192 = scmp.lt.s32.totalorder %s16, 3
      %p193 = pnand %p191, %p192
      %p194 = pneg %p193
      // Predicated region
      $region9: #{tpu_custom_call.1} parent=5 // pred_check
        _
      $region10: #{tpu_custom_call.1} parent=5 // pred_check_branch
        %196 = sbr.rel (%p193) target = $region12
      $region11: #{tpu_custom_call.1} parent=5 // pred_region
        %s197 = ssub.s32 %s16, 1
        // Predicated region
        $region13: #{tpu_custom_call.1} parent=11 // pred_check
          %p198 = pneg %p63
        $region14: #{tpu_custom_call.1} parent=11 // pred_check_branch
          %200 = sbr.rel (%p198) target = $region16
        $region15: #{tpu_custom_call.1} parent=11 // pred_region
          _
        $region16: #{tpu_custom_call.1} parent=11 // pred_fallthru
          _
        // Predicated region
        $region17: #{tpu_custom_call.1} parent=11 // pred_check
          %p201 = pneg %p84
        $region18: #{tpu_custom_call.1} parent=11 // pred_check_branch
          %203 = sbr.rel (%p201) target = $region20
        $region19: #{tpu_custom_call.1} parent=11 // pred_region
          _
        $region20: #{tpu_custom_call.1} parent=11 // pred_fallthru
          _
        // Predicated region
        $region21: #{tpu_custom_call.1} parent=11 // pred_check
          %p204 = pneg %p105
        $region22: #{tpu_custom_call.1} parent=11 // pred_check_branch
          %206 = sbr.rel (%p204) target = $region24
        $region23: #{tpu_custom_call.1} parent=11 // pred_region
          _
        $region24: #{tpu_custom_call.1} parent=11 // pred_fallthru
          _
      $region12: #{tpu_custom_call.1} parent=5 // pred_fallthru
        _
      %p207 = scmp.lt.s32.totalorder %s16, 2
      // Predicated region
      $region25: #{tpu_custom_call.1} parent=5 // pred_check
        %p208 = pneg %p207
      $region26: #{tpu_custom_call.1} parent=5 // pred_check_branch
        %210 = sbr.rel (%p208) target = $region28
      $region27: #{tpu_custom_call.1} parent=5 // pred_region
        // Predicated region
        $region29: #{tpu_custom_call.1} parent=27 // pred_check
          %p211 = pneg %p36
        $region30: #{tpu_custom_call.1} parent=27 // pred_check_branch
          %213 = sbr.rel (%p211) target = $region32
        $region31: #{tpu_custom_call.1} parent=27 // pred_region
          %s214 = smul.u32 16, %s16
          %p215 = scmp.lt.s32.totalorder %s214, 31
          %s216 = scalar_select %p215, %s214, 31
          %s217 = smul.addr %s216, 8
          %s218 = scalar_lea.vmem %s0, %s217
          %s219 = smul.u32 16, %s16
        $region32: #{tpu_custom_call.1} parent=27 // pred_fallthru
          _
      $region28: #{tpu_custom_call.1} parent=5 // pred_fallthru
        _
      %p220 = scmp.le.s32.totalorder 1, %s16
      %p221 = scmp.lt.s32.totalorder %s16, 3
      %p222 = pnand %p220, %p221
      %p223 = pneg %p222
      // Predicated region
      $region33: #{tpu_custom_call.1} parent=5 // pred_check
        _
      $region34: #{tpu_custom_call.1} parent=5 // pred_check_branch
        %225 = sbr.rel (%p222) target = $region36
      $region35: #{tpu_custom_call.1} parent=5 // pred_region
        %s226 = ssub.s32 %s16, 1
        %s227 = smul.u32 16, %s21
        %p228 = scmp.lt.s32.totalorder %s227, 31
        %s229 = scalar_select %p228, %s227, 31
        %s230 = smul.addr %s229, 8
        %s231 = scalar_lea.vmem %s0, %s230
        %p232 = pneg %p42
        %p233 = pneg %p39
        %p234 = pneg %p63
        %p235 = pneg %p60
        %p236 = pneg %p84
        %p237 = pneg %p81
        %p238 = pneg %p105
        %p239 = pneg %p102
        %p240 = pneg %p131
        %p241 = pneg %p128
        %s242 = sand.u32 %s118, 1
        %s243 = scalar_lea.sflag [#allocation3], %s242
        %s244 = sand.u32 %s118, 1
        %s245 = smul.addr %s244, 128
        %s246 = scalar_lea.vmem [#allocation2], %s245
        %p247 = pneg %p157
        %p248 = pneg %p154
        %s249 = smul.u32 16, %s21
        %p250 = scmp.lt.s32.totalorder %s249, 31
        %s251 = scalar_select %p250, %s249, 31
        %s252 = smul.addr %s251, 8
        %s253 = scalar_lea.vmem %s5, %s252
        %p254 = pneg %p183
        %p255 = pneg %p180
        %s256 = smul.u32 16, %s21
        %p257 = scmp.lt.s32.totalorder %s256, 31
        %s258 = scalar_select %p257, %s256, 31
        %s259 = smul.addr %s258, 8
        %s260 = scalar_lea.vmem %s6, %s259
        %s261 = smul.u32 16, %s21
        %p262 = scmp.lt.s32.totalorder %s261, 31
        %s263 = scalar_select %p262, %s261, 31
        %s264 = smul.addr %s263, 8
        %s265 = scalar_lea.vmem %s0, %s264
        %s266 = smul.u32 16, %s21
        %s267 = smul.u32 16, %s21
        %s268 = smul.u32 16, %s21
        %p269 = scmp.lt.s32.totalorder %s268, 31
        %s270 = scalar_select %p269, %s268, 31
        %s271 = smul.addr %s270, 8
        %s272 = scalar_lea.vmem %s5, %s271
        %s273 = smul.u32 16, %s21
        %s274 = smul.u32 16, %s21
        %p275 = scmp.lt.s32.totalorder %s274, 31
        %s276 = scalar_select %p275, %s274, 31
        %s277 = smul.addr %s276, 8
        %s278 = scalar_lea.vmem %s6, %s277
        %s279 = smul.u32 16, %s21
        %v280 = vld [vmem:[%s265] sm:$0xff]
        %v281 = vld [vmem:[%s265 + $0x8] sm:$0xff]
        %v282 = vld [vmem:[%s265 + $0x10] sm:$0xff]
        %v283 = vld [vmem:[%s265 + $0x18] sm:$0xff]
        %v284 = vld [vmem:[%s265 + $0x20] sm:$0xff]
        %v285 = vld [vmem:[%s265 + $0x28] sm:$0xff]
        %v286 = vld [vmem:[%s265 + $0x30] sm:$0xff]
        %v287 = vld [vmem:[%s265 + $0x38] sm:$0xff]
        %v288 = vld [vmem:[%s265 + $0x40] sm:$0xff]
        %v289 = vld [vmem:[%s265 + $0x48] sm:$0xff]
        %v290 = vld [vmem:[%s265 + $0x50] sm:$0xff]
        %v291 = vld [vmem:[%s265 + $0x58] sm:$0xff]
        %v292 = vld [vmem:[%s265 + $0x60] sm:$0xff]
        %v293 = vld [vmem:[%s265 + $0x68] sm:$0xff]
        %v294 = vld [vmem:[%s265 + $0x70] sm:$0xff]
        %v295 = vld [vmem:[%s265 + $0x78] sm:$0xff]
        %v296 = vld [vmem:[%s1] sm:$0xff]
        %v297 = vld [vmem:[%s1 + $0x8] sm:$0xff]
        %v298 = vld [vmem:[%s1 + $0x10] sm:$0xff]
        %v299 = vld [vmem:[%s1 + $0x18] sm:$0xff]
        %vm300 = vcmask 261120
        %v302 = vsel %vm300, %v280, 0
        %v305 = vsel %vm300, %v281, 0
        %v308 = vsel %vm300, %v282, 0
        %v311 = vsel %vm300, %v283, 0
        %v314 = vsel %vm300, %v284, 0
        %v317 = vsel %vm300, %v285, 0
        %v320 = vsel %vm300, %v286, 0
        %v323 = vsel %vm300, %v287, 0
        %v326 = vsel %vm300, %v288, 0
        %v329 = vsel %vm300, %v289, 0
        %v332 = vsel %vm300, %v290, 0
        %v335 = vsel %vm300, %v291, 0
        %v338 = vsel %vm300, %v292, 0
        %v341 = vsel %vm300, %v293, 0
        %v344 = vsel %vm300, %v294, 0
        %v347 = vsel %vm300, %v295, 0
        %349 = vmatprep.subr.mxu0 0.0
        %350 = vmatpush1.msra.mxu0 0.0
        %351 = vmatprep.subr.mxu0 0.0
        %352 = vmatpush1.msra.mxu0 0.0
        %353 = vmatprep.subr.mxu0 0.0
        %354 = vmatpush1.msra.mxu0 0.0
        %355 = vmatprep.subr.mxu0 0.0
        %356 = vmatpush1.msra.mxu0 0.0
        %357 = vmatprep.subr.mxu0 0.0
        %358 = vmatpush1.msra.mxu0 0.0
        %359 = vmatprep.subr.mxu0 0.0
        %360 = vmatpush1.msra.mxu0 0.0
        %361 = vmatprep.subr.mxu0 0.0
        %362 = vmatpush1.msra.mxu0 0.0
        %363 = vmatprep.subr.mxu0 0.0
        %364 = vmatpush1.msra.mxu0 0.0
        %365 = vmatprep.subr.mxu0 0.0
        %366 = vmatpush1.msra.mxu0 0.0
        %367 = vmatprep.subr.mxu0 0.0
        %368 = vmatpush1.msra.mxu0 0.0
        %369 = vmatprep.subr.mxu0 0.0
        %370 = vmatpush1.msra.mxu0 0.0
        %371 = vmatprep.subr.mxu0 0.0
        %372 = vmatpush1.msra.mxu0 0.0
        %373 = vmatprep.subr.mxu0 0.0
        %374 = vmatpush1.msra.mxu0 %v299
        %375 = vmatprep.subr.mxu0 0.0
        %376 = vmatpush1.msra.mxu0 %v298
        %377 = vmatprep.subr.mxu0 0.0
        %378 = vmatpush1.msra.mxu0 %v297
        %379 = vmatprep.subr.mxu0 0.0
        %380 = vmatpush1.msra.mxu0 %v296
        %381 = vmatprep.subr.mxu0 0.0
        %382 = vmatpush2.msra.mxu0 0.0
        %383 = vmatprep.subr.mxu0 0.0
        %384 = vmatpush2.msra.mxu0 0.0
        %385 = vmatprep.subr.mxu0 0.0
        %386 = vmatpush2.msra.mxu0 0.0
        %387 = vmatprep.subr.mxu0 0.0
        %388 = vmatpush2.msra.mxu0 0.0
        %389 = vmatprep.subr.mxu0 0.0
        %390 = vmatpush2.msra.mxu0 0.0
        %391 = vmatprep.subr.mxu0 0.0
        %392 = vmatpush2.msra.mxu0 0.0
        %393 = vmatprep.subr.mxu0 0.0
        %394 = vmatpush2.msra.mxu0 0.0
        %395 = vmatprep.subr.mxu0 0.0
        %396 = vmatpush2.msra.mxu0 0.0
        %397 = vmatprep.subr.mxu0 0.0
        %398 = vmatpush2.msra.mxu0 0.0
        %399 = vmatprep.subr.mxu0 0.0
        %400 = vmatpush2.msra.mxu0 0.0
        %401 = vmatprep.subr.mxu0 0.0
        %402 = vmatpush2.msra.mxu0 0.0
        %403 = vmatprep.subr.mxu0 0.0
        %404 = vmatpush2.msra.mxu0 0.0
        %405 = vmatprep.subr.mxu0 0.0
        %406 = vmatpush2.msra.mxu0 0.0
        %407 = vmatprep.subr.mxu0 0.0
        %408 = vmatpush2.msra.mxu0 0.0
        %409 = vmatprep.subr.mxu0 0.0
        %410 = vmatpush2.msra.mxu0 0.0
        %411 = vmatprep.subr.mxu0 0.0
        %412 = vmatpush2.msra.mxu0 0.0
        %413 = vmatprep.mubr.f32.mxu0 0.0
        %414 = vmatmul.mubr.f32.gmra.mxu0 %v302
        %v415 = vpop.f32.mrf.mxu0
        %v416 = vadd.f32 0.0, %v415
        %v417 = vpop.f32.mrf.mxu0
        %418 = vmatprep.mubr.f32.mxu0 0.0
        %419 = vmatmul.mubr.f32.gmra.mxu0 %v305
        %v420 = vpop.f32.mrf.mxu0
        %v421 = vadd.f32 0.0, %v420
        %v422 = vpop.f32.mrf.mxu0
        %423 = vmatprep.mubr.f32.mxu0 0.0
        %424 = vmatmul.mubr.f32.gmra.mxu0 %v308
        %v425 = vpop.f32.mrf.mxu0
        %v426 = vadd.f32 0.0, %v425
        %v427 = vpop.f32.mrf.mxu0
        %428 = vmatprep.mubr.f32.mxu0 0.0
        %429 = vmatmul.mubr.f32.gmra.mxu0 %v311
        %v430 = vpop.f32.mrf.mxu0
        %v431 = vadd.f32 0.0, %v430
        %v432 = vpop.f32.mrf.mxu0
        %433 = vmatprep.mubr.f32.mxu0 0.0
        %434 = vmatmul.mubr.f32.gmra.mxu0 %v314
        %v435 = vpop.f32.mrf.mxu0
        %v436 = vadd.f32 0.0, %v435
        %v437 = vpop.f32.mrf.mxu0
        %438 = vmatprep.mubr.f32.mxu0 0.0
        %439 = vmatmul.mubr.f32.gmra.mxu0 %v317
        %v440 = vpop.f32.mrf.mxu0
        %v441 = vadd.f32 0.0, %v440
        %v442 = vpop.f32.mrf.mxu0
        %443 = vmatprep.mubr.f32.mxu0 0.0
        %444 = vmatmul.mubr.f32.gmra.mxu0 %v320
        %v445 = vpop.f32.mrf.mxu0
        %v446 = vadd.f32 0.0, %v445
        %v447 = vpop.f32.mrf.mxu0
        %448 = vmatprep.mubr.f32.mxu0 0.0
        %449 = vmatmul.mubr.f32.gmra.mxu0 %v323
        %v450 = vpop.f32.mrf.mxu0
        %v451 = vadd.f32 0.0, %v450
        %v452 = vpop.f32.mrf.mxu0
        %453 = vmatprep.mubr.f32.mxu0 0.0
        %454 = vmatmul.mubr.f32.gmra.mxu0 %v326
        %v455 = vpop.f32.mrf.mxu0
        %v456 = vadd.f32 0.0, %v455
        %v457 = vpop.f32.mrf.mxu0
        %458 = vmatprep.mubr.f32.mxu0 0.0
        %459 = vmatmul.mubr.f32.gmra.mxu0 %v329
        %v460 = vpop.f32.mrf.mxu0
        %v461 = vadd.f32 0.0, %v460
        %v462 = vpop.f32.mrf.mxu0
        %463 = vmatprep.mubr.f32.mxu0 0.0
        %464 = vmatmul.mubr.f32.gmra.mxu0 %v332
        %v465 = vpop.f32.mrf.mxu0
        %v466 = vadd.f32 0.0, %v465
        %v467 = vpop.f32.mrf.mxu0
        %468 = vmatprep.mubr.f32.mxu0 0.0
        %469 = vmatmul.mubr.f32.gmra.mxu0 %v335
        %v470 = vpop.f32.mrf.mxu0
        %v471 = vadd.f32 0.0, %v470
        %v472 = vpop.f32.mrf.mxu0
        %473 = vmatprep.mubr.f32.mxu0 0.0
        %474 = vmatmul.mubr.f32.gmra.mxu0 %v338
        %v475 = vpop.f32.mrf.mxu0
        %v476 = vadd.f32 0.0, %v475
        %v477 = vpop.f32.mrf.mxu0
        %478 = vmatprep.mubr.f32.mxu0 0.0
        %479 = vmatmul.mubr.f32.gmra.mxu0 %v341
        %v480 = vpop.f32.mrf.mxu0
        %v481 = vadd.f32 0.0, %v480
        %v482 = vpop.f32.mrf.mxu0
        %483 = vmatprep.mubr.f32.mxu0 0.0
        %484 = vmatmul.mubr.f32.gmra.mxu0 %v344
        %v485 = vpop.f32.mrf.mxu0
        %v486 = vadd.f32 0.0, %v485
        %v487 = vpop.f32.mrf.mxu0
        %488 = vmatprep.mubr.f32.mxu0 0.0
        %489 = vmatmul.mubr.f32.gmra.mxu0 %v347
        %v490 = vpop.f32.mrf.mxu0
        %v491 = vadd.f32 0.0, %v490
        %v492 = vpop.f32.mrf.mxu0
        %493 = vdwg.mxu0
        %v494 = vld [vmem:[%s2] sm:$0x1]
        %v495 = vld [vmem:[%s3] sm:$0x1]
        %v497 = vlaneseq
        %v498 = vshrl.u32 %v497, 7
        %v499 = vsub.s32 0, %v498
        %v500 = vrot.slane %v494, %v499
        %v502 = vmul.f32 %v416, %v500
        %v503 = vmul.f32 %v421, %v500
        %v504 = vmul.f32 %v426, %v500
        %v505 = vmul.f32 %v431, %v500
        %v506 = vmul.f32 %v436, %v500
        %v507 = vmul.f32 %v441, %v500
        %v508 = vmul.f32 %v446, %v500
        %v509 = vmul.f32 %v451, %v500
        %v510 = vmul.f32 %v456, %v500
        %v511 = vmul.f32 %v461, %v500
        %v512 = vmul.f32 %v466, %v500
        %v513 = vmul.f32 %v471, %v500
        %v514 = vmul.f32 %v476, %v500
        %v515 = vmul.f32 %v481, %v500
        %v516 = vmul.f32 %v486, %v500
        %v517 = vmul.f32 %v491, %v500
        %518 = vadd.xlane.f32.xlu0 %v502
        %v519 = vpop.xlane.xlu0 %518
        %520 = vadd.xlane.f32.xlu0 %v503
        %v521 = vpop.xlane.xlu0 %520
        %522 = vadd.xlane.f32.xlu0 %v504
        %v523 = vpop.xlane.xlu0 %522
        %524 = vadd.xlane.f32.xlu0 %v505
        %v525 = vpop.xlane.xlu0 %524
        %526 = vadd.xlane.f32.xlu0 %v506
        %v527 = vpop.xlane.xlu0 %526
        %528 = vadd.xlane.f32.xlu0 %v507
        %v529 = vpop.xlane.xlu0 %528
        %530 = vadd.xlane.f32.xlu0 %v508
        %v531 = vpop.xlane.xlu0 %530
        %532 = vadd.xlane.f32.xlu0 %v509
        %v533 = vpop.xlane.xlu0 %532
        %534 = vadd.xlane.f32.xlu0 %v510
        %v535 = vpop.xlane.xlu0 %534
        %536 = vadd.xlane.f32.xlu0 %v511
        %v537 = vpop.xlane.xlu0 %536
        %538 = vadd.xlane.f32.xlu0 %v512
        %v539 = vpop.xlane.xlu0 %538
        %540 = vadd.xlane.f32.xlu0 %v513
        %v541 = vpop.xlane.xlu0 %540
        %542 = vadd.xlane.f32.xlu0 %v514
        %v543 = vpop.xlane.xlu0 %542
        %544 = vadd.xlane.f32.xlu0 %v515
        %v545 = vpop.xlane.xlu0 %544
        %546 = vadd.xlane.f32.xlu0 %v516
        %v547 = vpop.xlane.xlu0 %546
        %548 = vadd.xlane.f32.xlu0 %v517
        %v549 = vpop.xlane.xlu0 %548
        %vm550 = vcmask 7168
        %551 = vst.msk [vmem:[%s272] sm:$0xff] %vm550, %v519
        %552 = vst.msk [vmem:[%s272 + $0x8] sm:$0xff] %vm550, %v521
        %553 = vst.msk [vmem:[%s272 + $0x10] sm:$0xff] %vm550, %v523
        %554 = vst.msk [vmem:[%s272 + $0x18] sm:$0xff] %vm550, %v525
        %555 = vst.msk [vmem:[%s272 + $0x20] sm:$0xff] %vm550, %v527
        %556 = vst.msk [vmem:[%s272 + $0x28] sm:$0xff] %vm550, %v529
        %557 = vst.msk [vmem:[%s272 + $0x30] sm:$0xff] %vm550, %v531
        %558 = vst.msk [vmem:[%s272 + $0x38] sm:$0xff] %vm550, %v533
        %559 = vst.msk [vmem:[%s272 + $0x40] sm:$0xff] %vm550, %v535
        %560 = vst.msk [vmem:[%s272 + $0x48] sm:$0xff] %vm550, %v537
        %561 = vst.msk [vmem:[%s272 + $0x50] sm:$0xff] %vm550, %v539
        %562 = vst.msk [vmem:[%s272 + $0x58] sm:$0xff] %vm550, %v541
        %563 = vst.msk [vmem:[%s272 + $0x60] sm:$0xff] %vm550, %v543
        %564 = vst.msk [vmem:[%s272 + $0x68] sm:$0xff] %vm550, %v545
        %565 = vst.msk [vmem:[%s272 + $0x70] sm:$0xff] %vm550, %v547
        %566 = vst.msk [vmem:[%s272 + $0x78] sm:$0xff] %vm550, %v549
        %v568 = vlaneseq
        %v569 = vshrl.u32 %v568, 7
        %v570 = vsub.s32 0, %v569
        %v571 = vrot.slane %v495, %v570
        %v573 = vmul.f32 %v416, %v571
        %v574 = vmul.f32 %v421, %v571
        %v575 = vmul.f32 %v426, %v571
        %v576 = vmul.f32 %v431, %v571
        %v577 = vmul.f32 %v436, %v571
        %v578 = vmul.f32 %v441, %v571
        %v579 = vmul.f32 %v446, %v571
        %v580 = vmul.f32 %v451, %v571
        %v581 = vmul.f32 %v456, %v571
        %v582 = vmul.f32 %v461, %v571
        %v583 = vmul.f32 %v466, %v571
        %v584 = vmul.f32 %v471, %v571
        %v585 = vmul.f32 %v476, %v571
        %v586 = vmul.f32 %v481, %v571
        %v587 = vmul.f32 %v486, %v571
        %v588 = vmul.f32 %v491, %v571
        %589 = vadd.xlane.f32.xlu0 %v573
        %v590 = vpop.xlane.xlu0 %589
        %591 = vadd.xlane.f32.xlu0 %v574
        %v592 = vpop.xlane.xlu0 %591
        %593 = vadd.xlane.f32.xlu0 %v575
        %v594 = vpop.xlane.xlu0 %593
        %595 = vadd.xlane.f32.xlu0 %v576
        %v596 = vpop.xlane.xlu0 %595
        %597 = vadd.xlane.f32.xlu0 %v577
        %v598 = vpop.xlane.xlu0 %597
        %599 = vadd.xlane.f32.xlu0 %v578
        %v600 = vpop.xlane.xlu0 %599
        %601 = vadd.xlane.f32.xlu0 %v579
        %v602 = vpop.xlane.xlu0 %601
        %603 = vadd.xlane.f32.xlu0 %v580
        %v604 = vpop.xlane.xlu0 %603
        %605 = vadd.xlane.f32.xlu0 %v581
        %v606 = vpop.xlane.xlu0 %605
        %607 = vadd.xlane.f32.xlu0 %v582
        %v608 = vpop.xlane.xlu0 %607
        %609 = vadd.xlane.f32.xlu0 %v583
        %v610 = vpop.xlane.xlu0 %609
        %611 = vadd.xlane.f32.xlu0 %v584
        %v612 = vpop.xlane.xlu0 %611
        %613 = vadd.xlane.f32.xlu0 %v585
        %v614 = vpop.xlane.xlu0 %613
        %615 = vadd.xlane.f32.xlu0 %v586
        %v616 = vpop.xlane.xlu0 %615
        %617 = vadd.xlane.f32.xlu0 %v587
        %v618 = vpop.xlane.xlu0 %617
        %619 = vadd.xlane.f32.xlu0 %v588
        %v620 = vpop.xlane.xlu0 %619
        %621 = vst.msk [vmem:[%s278] sm:$0xff] %vm550, %v590
        %622 = vst.msk [vmem:[%s278 + $0x8] sm:$0xff] %vm550, %v592
        %623 = vst.msk [vmem:[%s278 + $0x10] sm:$0xff] %vm550, %v594
        %624 = vst.msk [vmem:[%s278 + $0x18] sm:$0xff] %vm550, %v596
        %625 = vst.msk [vmem:[%s278 + $0x20] sm:$0xff] %vm550, %v598
        %626 = vst.msk [vmem:[%s278 + $0x28] sm:$0xff] %vm550, %v600
        %627 = vst.msk [vmem:[%s278 + $0x30] sm:$0xff] %vm550, %v602
        %628 = vst.msk [vmem:[%s278 + $0x38] sm:$0xff] %vm550, %v604
        %629 = vst.msk [vmem:[%s278 + $0x40] sm:$0xff] %vm550, %v606
        %630 = vst.msk [vmem:[%s278 + $0x48] sm:$0xff] %vm550, %v608
        %631 = vst.msk [vmem:[%s278 + $0x50] sm:$0xff] %vm550, %v610
        %632 = vst.msk [vmem:[%s278 + $0x58] sm:$0xff] %vm550, %v612
        %633 = vst.msk [vmem:[%s278 + $0x60] sm:$0xff] %vm550, %v614
        %634 = vst.msk [vmem:[%s278 + $0x68] sm:$0xff] %vm550, %v616
        %635 = vst.msk [vmem:[%s278 + $0x70] sm:$0xff] %vm550, %v618
        %636 = vst.msk [vmem:[%s278 + $0x78] sm:$0xff] %vm550, %v620
        %637 = vst [vmem:[%s246] sm:$0xff] %v416
        %638 = vst [vmem:[%s246 + $0x8] sm:$0xff] %v421
        %639 = vst [vmem:[%s246 + $0x10] sm:$0xff] %v426
        %640 = vst [vmem:[%s246 + $0x18] sm:$0xff] %v431
        %641 = vst [vmem:[%s246 + $0x20] sm:$0xff] %v436
        %642 = vst [vmem:[%s246 + $0x28] sm:$0xff] %v441
        %643 = vst [vmem:[%s246 + $0x30] sm:$0xff] %v446
        %644 = vst [vmem:[%s246 + $0x38] sm:$0xff] %v451
        %645 = vst [vmem:[%s246 + $0x40] sm:$0xff] %v456
        %646 = vst [vmem:[%s246 + $0x48] sm:$0xff] %v461
        %647 = vst [vmem:[%s246 + $0x50] sm:$0xff] %v466
        %648 = vst [vmem:[%s246 + $0x58] sm:$0xff] %v471
        %649 = vst [vmem:[%s246 + $0x60] sm:$0xff] %v476
        %650 = vst [vmem:[%s246 + $0x68] sm:$0xff] %v481
        %651 = vst [vmem:[%s246 + $0x70] sm:$0xff] %v486
        %652 = vst [vmem:[%s246 + $0x78] sm:$0xff] %v491
        %s653 = sand.u32 %s118, 1
        %s654 = scalar_lea.sflag [#allocation3], %s653
        %s655 = sand.u32 %s118, 1
        %s656 = smul.addr %s655, 128
        %s657 = scalar_lea.vmem [#allocation2], %s656
        %s658 = smul.u32 16, %s21
        %p659 = scmp.lt.s32.totalorder %s658, 31
        %s660 = scalar_select %p659, %s658, 31
        %s661 = smul.addr %s660, 8
        %s662 = scalar_lea.vmem %s5, %s661
        %s663 = smul.u32 16, %s21
        %p664 = scmp.lt.s32.totalorder %s663, 31
        %s665 = scalar_select %p664, %s663, 31
        %s666 = smul.addr %s665, 8
        %s667 = scalar_lea.vmem %s6, %s666
        // Predicated region
        $region37: #{tpu_custom_call.1} parent=35 // pred_check
          %p668 = pneg %p128
        $region38: #{tpu_custom_call.1} parent=35 // pred_check_branch
          %670 = sbr.rel (%p668) target = $region40
        $region39: #{tpu_custom_call.1} parent=35 // pred_region
          %s671 = smul.u32 16, %s21
          %s673 = ssub.s32 2048, 2048
          %674 = vsyncadd %s654, %s673
          %s675 = smul.addr %s671, 128
          %s676 = scalar_lea.hbm %s4, %s675
          %s677 = sshll.u32 %s657, 4
          %s678 = int_to_ptr.vmem [resolvable:$true] %s677
          %683 = dma.vmem_to_hbm [thread:$0]  %s678, 2048, %s676, %s654, 128, 128, 8
        $region40: #{tpu_custom_call.1} parent=35 // pred_fallthru
          _
        // Predicated region
        $region41: #{tpu_custom_call.1} parent=35 // pred_check
          %p684 = pneg %p154
        $region42: #{tpu_custom_call.1} parent=35 // pred_check_branch
          %686 = sbr.rel (%p684) target = $region44
        $region43: #{tpu_custom_call.1} parent=35 // pred_region
          %s687 = smul.u32 16, %s21
        $region44: #{tpu_custom_call.1} parent=35 // pred_fallthru
          _
        // Predicated region
        $region45: #{tpu_custom_call.1} parent=35 // pred_check
          %p688 = pneg %p180
        $region46: #{tpu_custom_call.1} parent=35 // pred_check_branch
          %690 = sbr.rel (%p688) target = $region48
        $region47: #{tpu_custom_call.1} parent=35 // pred_region
          %s691 = smul.u32 16, %s21
        $region48: #{tpu_custom_call.1} parent=35 // pred_fallthru
          _
      $region36: #{tpu_custom_call.1} parent=5 // pred_fallthru
        _
      %p692 = scmp.le.s32.totalorder 2, %s16
      // Predicated region
      $region49: #{tpu_custom_call.1} parent=5 // pred_check
        %p693 = pneg %p692
      $region50: #{tpu_custom_call.1} parent=5 // pred_check_branch
        %695 = sbr.rel (%p693) target = $region52
      $region51: #{tpu_custom_call.1} parent=5 // pred_region
        %s696 = ssub.s32 %s16, 2
        // Predicated region
        $region53: #{tpu_custom_call.1} parent=51 // pred_check
          %p697 = pneg %p134
        $region54: #{tpu_custom_call.1} parent=51 // pred_check_branch
          %699 = sbr.rel (%p697) target = $region56
        $region55: #{tpu_custom_call.1} parent=51 // pred_region
          %s700 = sand.u32 %s119, 1
          %s701 = scalar_lea.sflag [#allocation3], %s700
          %s702 = sand.u32 %s119, 1
          %s703 = smul.addr %s702, 128
          %s704 = scalar_lea.vmem [#allocation2], %s703
          %705 = dma.done %s701, 2048
        $region56: #{tpu_custom_call.1} parent=51 // pred_fallthru
          _
        // Predicated region
        $region57: #{tpu_custom_call.1} parent=51 // pred_check
          %p706 = pneg %p160
        $region58: #{tpu_custom_call.1} parent=51 // pred_check_branch
          %708 = sbr.rel (%p706) target = $region60
        $region59: #{tpu_custom_call.1} parent=51 // pred_region
          %s709 = smul.u32 16, %s22
          %p710 = scmp.lt.s32.totalorder %s709, 31
          %s711 = scalar_select %p710, %s709, 31
          %s712 = smul.addr %s711, 8
          %s713 = scalar_lea.vmem %s5, %s712
        $region60: #{tpu_custom_call.1} parent=51 // pred_fallthru
          _
        // Predicated region
        $region61: #{tpu_custom_call.1} parent=51 // pred_check
          %p714 = pneg %p186
        $region62: #{tpu_custom_call.1} parent=51 // pred_check_branch
          %716 = sbr.rel (%p714) target = $region64
        $region63: #{tpu_custom_call.1} parent=51 // pred_region
          %s717 = smul.u32 16, %s22
          %p718 = scmp.lt.s32.totalorder %s717, 31
          %s719 = scalar_select %p718, %s717, 31
          %s720 = smul.addr %s719, 8
          %s721 = scalar_lea.vmem %s6, %s720
        $region64: #{tpu_custom_call.1} parent=51 // pred_fallthru
          _
      $region52: #{tpu_custom_call.1} parent=5 // pred_fallthru
        _
    $region6: #{tpu_custom_call.1} parent=1 // loop_footer
      %s20 = sadd.s32 1, %s16
    $region7: #{tpu_custom_call.1} parent=1 // loop_footer_branch
      %15 = sbr.rel target = $region3
    $region8: #{tpu_custom_call.1} parent=1 // loop_exit
      _
    %722 = vsyncpa [#allocation3], 1
    %s723 = scalar_lea.sflag [#allocation3], 1
    %724 = vsyncpa %s723, 1

</llo_original>
